<compile_context>
chip_gen: v7x
topology: tpu7x:2x2x1
jax: 0.10.0
libtpu: 0.0.40
codegen_flags: <defaults>
</compile_context>

<pallas_src>
import math
from functools import partial

import jax
import jax.numpy as jnp
from jax import lax
from jax.experimental import pallas as pl
from jax.experimental.pallas import tpu as pltpu


def _round_up(n, m):
    return ((n + m - 1) // m) * m


def _dueling_dqn_kernel(action_size, x_ref, w1_ref, b1_ref, w2_ref, b2_ref,
                        wh_ref, bh_ref, out_ref):
    x = x_ref[...]

    # fc1 + relu
    h1 = jnp.dot(x, w1_ref[...], preferred_element_type=jnp.float32) + b1_ref[...]
    h1 = jnp.maximum(h1, 0.0)

    # fc2 + relu
    h2 = jnp.dot(h1, w2_ref[...], preferred_element_type=jnp.float32) + b2_ref[...]
    h2 = jnp.maximum(h2, 0.0)

    # Fused head matmul (single MXU pass). Column layout of wh/bh:
    #   [0, A)          -> advantage
    #   A               -> value
    #   (A, head_w)     -> zero padding (zero weights & biases)
    heads = jnp.dot(h2, wh_ref[...], preferred_element_type=jnp.float32) + bh_ref[...]

    # Value column via static lane slice (action_size is a Python int).
    value = heads[:, action_size:action_size + 1]

    # Advantage mean: masked cross-lane reduce (rides the otherwise-idle XLU).
    col = lax.broadcasted_iota(jnp.int32, heads.shape, dimension=1)
    adv_sum = jnp.sum(jnp.where(col < action_size, heads, 0.0),
                      axis=1, keepdims=True)
    adv_mean = adv_sum / action_size

    # q = value + (adv - mean(adv)); only lanes [0, action_size) are meaningful
    # (wrapper slices them).  Output block is only head_w (8) lanes wide.
    out_ref[...] = heads + (value - adv_mean)


def dueling_dqn_forward(x, params, *, block_b=2048, min_tiles=2):
    """x: (B, state_size) f32; params from init_params. Returns (B, action_size) f32.

    For best end-to-end performance call this under the caller's jax.jit so the
    batch pad and the final [:B, :action_size] slice fuse with surrounding ops.
    """
    B, state_size = x.shape
    action_size = int(params["action_size"])
    head_w = params["wh"].shape[1]  # round_up(action_size + 1, 8)

    # Pick tile count first, then tile size (always a multiple of 8) so batch
    # padding stays < 8-ish rows and v7x gets >= 2 grid steps to shard.
    n_tiles = max(min_tiles, pl.cdiv(B, block_b))
    tb = _round_up(max(pl.cdiv(B, n_tiles), 1), 8)
    b_pad = _round_up(B, tb)
    if b_pad != B:
        x = jnp.pad(x, ((0, b_pad - B), (0, 0)))

    grid = (b_pad // tb,)

    def resident(shape):
        # Weights/biases: whole-array block, same block every grid step -> VMEM-resident.
        return pl.BlockSpec(shape, lambda i: (0, 0))

    out = pl.pallas_call(
        partial(_dueling_dqn_kernel, action_size),
        out_shape=jax.ShapeDtypeStruct((b_pad, head_w), jnp.float32),
        grid=grid,
        in_specs=[
            pl.BlockSpec((tb, state_size), lambda i: (i, 0)),
            resident(params["w1"].shape),
            resident(params["b1"].shape),
            resident(params["w2"].shape),
            resident(params["b2"].shape),
            resident(params["wh"].shape),
            resident(params["bh"].shape),
        ],
        out_specs=pl.BlockSpec((tb, head_w), lambda i: (i, 0)),
        compiler_params=pltpu.CompilerParams(
            dimension_semantics=("parallel",)),
    )(
        x,
        params["w1"], params["b1"],
        params["w2"], params["b2"],
        params["wh"], params["bh"],
    )

    return out[:B, :action_size]


def init_params(key, state_size, action_size):
    """PyTorch nn.Linear-style init (U[-1/sqrt(fan_in), 1/sqrt(fan_in)]).

    Weights stored as (in, out); biases as (1, out). The value/advantage heads
    are fused and padded to round_up(action_size+1, 8) columns at init time.
    """
    def linear(key, fan_in, fan_out):
        kw, kb = jax.random.split(key)
        bound = 1.0 / math.sqrt(fan_in)
        w = jax.random.uniform(kw, (fan_in, fan_out), jnp.float32, -bound, bound)
        b = jax.random.uniform(kb, (1, fan_out), jnp.float32, -bound, bound)
        return w, b

    k1, k2, k3, k4 = jax.random.split(key, 4)
    w1, b1 = linear(k1, state_size, 24)
    w2, b2 = linear(k2, 24, 24)
    wv, bv = linear(k3, 24, 1)
    wa, ba = linear(k4, 24, action_size)

    head_w = _round_up(action_size + 1, 8)
    wh = jnp.zeros((24, head_w), jnp.float32)
    wh = wh.at[:, :action_size].set(wa)
    wh = wh.at[:, action_size:action_size + 1].set(wv)
    bh = jnp.zeros((1, head_w), jnp.float32)
    bh = bh.at[:, :action_size].set(ba)
    bh = bh.at[:, action_size:action_size + 1].set(bv)

    return {"w1": w1, "b1": b1, "w2": w2, "b2": b2,
            "wh": wh, "bh": bh,
            "wv": wv, "bv": bv, "wa": wa, "ba": ba,
            "action_size": action_size}


def reference_forward(x, p):
    h1 = jnp.maximum(x @ p["w1"] + p["b1"], 0.0)
    h2 = jnp.maximum(h1 @ p["w2"] + p["b2"], 0.0)
    value = h2 @ p["wv"] + p["bv"]
    adv = h2 @ p["wa"] + p["ba"]
    return value + (adv - jnp.mean(adv, axis=1, keepdims=True))


if __name__ == "__main__":
    state_size = 4      # CartPole observation dim
    action_size = 2     # CartPole action dim

    key = jax.random.PRNGKey(0)
    kx1, kx2, kp = jax.random.split(key, 3)
    params = init_params(kp, state_size, action_size)

    # jit the wrapper so the batch pad / output slice fuse around the kernel.
    fwd_default = jax.jit(lambda x: dueling_dqn_forward(x, params))
    fwd_tiled = jax.jit(lambda x: dueling_dqn_forward(x, params, block_b=16))

    # Small deterministic case (deployment-style batch).
    x_small = jax.random.normal(kx1, (8, state_size), dtype=jnp.float32)
    q_small = jax.block_until_ready(fwd_default(x_small))
    q_small_ref = reference_forward(x_small, params)
    assert q_small.shape == (8, action_size)
    assert jnp.allclose(q_small, q_small_ref, atol=1e-5, rtol=1e-5), "mismatch (B=8)"

    # Odd batch with small block_b to exercise the padding / multi-tile grid path.
    x_odd = jax.random.normal(kx2, (37, state_size), dtype=jnp.float32)
    q_odd = jax.block_until_ready(fwd_tiled(x_odd))
    q_odd_ref = reference_forward(x_odd, params)
    assert q_odd.shape == (37, action_size)
    assert jnp.allclose(q_odd, q_odd_ref, atol=1e-5, rtol=1e-5), "mismatch (B=37)"

    print("KERNEL_OK")
</pallas_src>

<mosaic_0001>
module attributes {stable_mosaic.version = 11 : i64} {
  func.func @_dueling_dqn_kernel(%arg0: i32, %arg1: memref<8x4xf32, #tpu.memory_space<vmem>>, %arg2: memref<4x24xf32, #tpu.memory_space<vmem>>, %arg3: memref<1x24xf32, #tpu.memory_space<vmem>>, %arg4: memref<24x24xf32, #tpu.memory_space<vmem>>, %arg5: memref<1x24xf32, #tpu.memory_space<vmem>>, %arg6: memref<24x8xf32, #tpu.memory_space<vmem>>, %arg7: memref<1x8xf32, #tpu.memory_space<vmem>>, %arg8: memref<8x8xf32, #tpu.memory_space<vmem>>) attributes {dimension_semantics = [#tpu.dimension_semantics<parallel>], iteration_bounds = array<i64: 1>, scalar_prefetch = 0 : i64, scratch_operands = 0 : i64, tpu.core_type = #tpu.core_type<tc>, window_params = [{transform_indices = @transform_0, window_bounds = array<i64: 8, 4>}, {pipeline_mode = #tpu.pipeline_mode<synchronous>, transform_indices = @transform_1, window_bounds = array<i64: 4, 24>}, {pipeline_mode = #tpu.pipeline_mode<synchronous>, transform_indices = @transform_2, window_bounds = array<i64: 1, 24>}, {pipeline_mode = #tpu.pipeline_mode<synchronous>, transform_indices = @transform_3, window_bounds = array<i64: 24, 24>}, {pipeline_mode = #tpu.pipeline_mode<synchronous>, transform_indices = @transform_4, window_bounds = array<i64: 1, 24>}, {pipeline_mode = #tpu.pipeline_mode<synchronous>, transform_indices = @transform_5, window_bounds = array<i64: 24, 8>}, {pipeline_mode = #tpu.pipeline_mode<synchronous>, transform_indices = @transform_6, window_bounds = array<i64: 1, 8>}, {transform_indices = @transform_7, window_bounds = array<i64: 8, 8>}]} {
    %c0 = arith.constant 0 : index
    %c0_0 = arith.constant 0 : index
    %0 = vector.load %arg1[%c0, %c0_0] : memref<8x4xf32, #tpu.memory_space<vmem>>, vector<8x4xf32>
    %c0_1 = arith.constant 0 : index
    %c0_2 = arith.constant 0 : index
    %1 = vector.load %arg2[%c0_1, %c0_2] : memref<4x24xf32, #tpu.memory_space<vmem>>, vector<4x24xf32>
    %cst = arith.constant dense<0.000000e+00> : vector<8x24xf32>
    %2 = tpu.matmul %0, %1, %cst {dimension_numbers = #tpu.dot_dimension_numbers<[1], [0], [0], [1], [0, 0, 1, 1], [], []>} : vector<8x4xf32>, vector<4x24xf32>, vector<8x24xf32> -> vector<8x24xf32>
    %c0_3 = arith.constant 0 : index
    %c0_4 = arith.constant 0 : index
    %3 = vector.load %arg3[%c0_3, %c0_4] : memref<1x24xf32, #tpu.memory_space<vmem>>, vector<1x24xf32>
    %4 = vector.broadcast %3 : vector<1x24xf32> to vector<8x24xf32>
    %5 = arith.addf %2, %4 : vector<8x24xf32>
    %cst_5 = arith.constant 0.000000e+00 : f32
    %6 = vector.broadcast %cst_5 : f32 to vector<8x24xf32>
    %7 = arith.maximumf %5, %6 : vector<8x24xf32>
    %c0_6 = arith.constant 0 : index
    %c0_7 = arith.constant 0 : index
    %8 = vector.load %arg4[%c0_6, %c0_7] : memref<24x24xf32, #tpu.memory_space<vmem>>, vector<24x24xf32>
    %cst_8 = arith.constant dense<0.000000e+00> : vector<8x24xf32>
    %9 = tpu.matmul %7, %8, %cst_8 {dimension_numbers = #tpu.dot_dimension_numbers<[1], [0], [0], [1], [0, 0, 1, 1], [], []>} : vector<8x24xf32>, vector<24x24xf32>, vector<8x24xf32> -> vector<8x24xf32>
    %c0_9 = arith.constant 0 : index
    %c0_10 = arith.constant 0 : index
    %10 = vector.load %arg5[%c0_9, %c0_10] : memref<1x24xf32, #tpu.memory_space<vmem>>, vector<1x24xf32>
    %11 = vector.broadcast %10 : vector<1x24xf32> to vector<8x24xf32>
    %12 = arith.addf %9, %11 : vector<8x24xf32>
    %cst_11 = arith.constant 0.000000e+00 : f32
    %13 = vector.broadcast %cst_11 : f32 to vector<8x24xf32>
    %14 = arith.maximumf %12, %13 : vector<8x24xf32>
    %c0_12 = arith.constant 0 : index
    %c0_13 = arith.constant 0 : index
    %15 = vector.load %arg6[%c0_12, %c0_13] : memref<24x8xf32, #tpu.memory_space<vmem>>, vector<24x8xf32>
    %cst_14 = arith.constant dense<0.000000e+00> : vector<8x8xf32>
    %16 = tpu.matmul %14, %15, %cst_14 {dimension_numbers = #tpu.dot_dimension_numbers<[1], [0], [0], [1], [0, 0, 1, 1], [], []>} : vector<8x24xf32>, vector<24x8xf32>, vector<8x8xf32> -> vector<8x8xf32>
    %c0_15 = arith.constant 0 : index
    %c0_16 = arith.constant 0 : index
    %17 = vector.load %arg7[%c0_15, %c0_16] : memref<1x8xf32, #tpu.memory_space<vmem>>, vector<1x8xf32>
    %18 = vector.broadcast %17 : vector<1x8xf32> to vector<8x8xf32>
    %19 = arith.addf %16, %18 : vector<8x8xf32>
    %20 = vector.extract_strided_slice %19 {offsets = [0, 2], sizes = [8, 1], strides = [1, 1]} : vector<8x8xf32> to vector<8x1xf32>
    %21 = tpu.iota {dimensions = array<i32: 1>} : vector<8x8xi32>
    %c2_i32 = arith.constant 2 : i32
    %22 = vector.broadcast %c2_i32 : i32 to vector<8x8xi32>
    %23 = arith.cmpi slt, %21, %22 : vector<8x8xi32>
    %cst_17 = arith.constant 0.000000e+00 : f32
    %24 = vector.broadcast %cst_17 : f32 to vector<8x8xf32>
    %25 = arith.select %23, %19, %24 : vector<8x8xi1>, vector<8x8xf32>
    %cst_18 = arith.constant dense<0.000000e+00> : vector<8xf32>
    %26 = vector.multi_reduction <add>, %25, %cst_18 [1] : vector<8x8xf32> to vector<8xf32>
    %27 = vector.shape_cast %26 : vector<8xf32> to vector<8x1xf32>
    %cst_19 = arith.constant 2.000000e+00 : f32
    %28 = vector.broadcast %cst_19 : f32 to vector<8x1xf32>
    %29 = arith.divf %27, %28 : vector<8x1xf32>
    %30 = arith.subf %20, %29 : vector<8x1xf32>
    %31 = vector.broadcast %30 : vector<8x1xf32> to vector<8x8xf32>
    %32 = arith.addf %19, %31 : vector<8x8xf32>
    %c0_20 = arith.constant 0 : index
    %c0_21 = arith.constant 0 : index
    %33 = vector.load %arg8[%c0_20, %c0_21] : memref<8x8xf32, #tpu.memory_space<vmem>>, vector<8x8xf32>
    tpu.vector_store %arg8[%c0_20, %c0_21], %32 {strides = array<i32>} : memref<8x8xf32, #tpu.memory_space<vmem>>, vector<8x8xf32>,
    return
  }
  func.func @transform_0(%arg0: i32) -> (i32, i32) {
    %c0_i32 = arith.constant 0 : i32
    %c0_i32_0 = arith.constant 0 : i32
    return %arg0, %c0_i32 : i32, i32
  }
  func.func @transform_1(%arg0: i32) -> (i32, i32) {
    %c0_i32 = arith.constant 0 : i32
    %c0_i32_0 = arith.constant 0 : i32
    %c0_i32_1 = arith.constant 0 : i32
    return %c0_i32, %c0_i32_0 : i32, i32
  }
  func.func @transform_2(%arg0: i32) -> (i32, i32) {
    %c0_i32 = arith.constant 0 : i32
    %c0_i32_0 = arith.constant 0 : i32
    %c0_i32_1 = arith.constant 0 : i32
    return %c0_i32, %c0_i32_0 : i32, i32
  }
  func.func @transform_3(%arg0: i32) -> (i32, i32) {
    %c0_i32 = arith.constant 0 : i32
    %c0_i32_0 = arith.constant 0 : i32
    %c0_i32_1 = arith.constant 0 : i32
    return %c0_i32, %c0_i32_0 : i32, i32
  }
  func.func @transform_4(%arg0: i32) -> (i32, i32) {
    %c0_i32 = arith.constant 0 : i32
    %c0_i32_0 = arith.constant 0 : i32
    %c0_i32_1 = arith.constant 0 : i32
    return %c0_i32, %c0_i32_0 : i32, i32
  }
  func.func @transform_5(%arg0: i32) -> (i32, i32) {
    %c0_i32 = arith.constant 0 : i32
    %c0_i32_0 = arith.constant 0 : i32
    %c0_i32_1 = arith.constant 0 : i32
    return %c0_i32, %c0_i32_0 : i32, i32
  }
  func.func @transform_6(%arg0: i32) -> (i32, i32) {
    %c0_i32 = arith.constant 0 : i32
    %c0_i32_0 = arith.constant 0 : i32
    %c0_i32_1 = arith.constant 0 : i32
    return %c0_i32, %c0_i32_0 : i32, i32
  }
  func.func @transform_7(%arg0: i32) -> (i32, i32) {
    %c0_i32 = arith.constant 0 : i32
    %c0_i32_0 = arith.constant 0 : i32
    return %arg0, %c0_i32 : i32, i32
  }
}

</mosaic_0001>

<llo_original>
// kernel: _lambda_.1
$region0: #{_lambda_.1}
  #allocation0 [shape = 'u32[]', space=smem, size = 0x4, offset = 0x4, fixed_abs, tag = 'smem constant byte address 0x4 - core index']
  #allocation1 [shape = 'u32[144,128]{1,0:T(1,128)}', space=vmem, size = 0x12000, scoped, tag = 'internal scratch']
  %s0 = inlined_call_operand.vmem [shape: f32[8,4], index: 0, kind: input, shape index: {}]
  %s1 = inlined_call_operand.vmem [shape: f32[4,24], index: 1, kind: input, shape index: {}]
  %s2 = inlined_call_operand.hbm [shape: f32[1,24], index: 2, kind: input, shape index: {}]
  %s3 = inlined_call_operand.hbm [shape: f32[24,24], index: 3, kind: input, shape index: {}]
  %s4 = inlined_call_operand.vmem [shape: f32[1,24], index: 4, kind: input, shape index: {}]
  %s5 = inlined_call_operand.vmem [shape: f32[24,8], index: 5, kind: input, shape index: {}]
  %s6 = inlined_call_operand.vmem [shape: f32[1,8], index: 6, kind: input, shape index: {}]
  %s7 = inlined_call_operand.vmem [shape: f32[8,8], index: 7, kind: output, shape index: {}]
  %s8 = sld [smem:[#allocation0]]
  $region46: #{_lambda_.1} parent=0
    _
  %s10 = ssub.s32 1, %s8
  %s11 = scalar_select 0, %s10, %s8
  $region1: #{_lambda_.1} parent=0
    #allocation2 [shape = 'u8[512]{0}', space=vmem, size = 0x400, scoped, tag = 'input window, operand 2, single buffered']
    #allocation3 [shape = 's32[1]{0}', space=sflag, size = 0x4, scoped, tag = 'scoped memory for _lambda_.1']
    #allocation4 [shape = 'u8[12288]{0}', space=vmem, size = 0x3000, scoped, tag = 'input window, operand 3, single buffered']
    #allocation5 [shape = 's32[1]{0}', space=sflag, size = 0x4, scoped, tag = 'scoped memory for _lambda_.1']
    %12 = vsyncpa [#allocation3], 0
    %13 = vsyncpa [#allocation5], 0
    // Predicated region
    $region2: #{_lambda_.1} parent=1 // pred_check
      _
    $region3: #{_lambda_.1} parent=1 // pred_check_branch
      %15 = sbr.rel (0) target = $region5
    $region4: #{_lambda_.1} parent=1 // pred_region
      _
    $region5: #{_lambda_.1} parent=1 // pred_fallthru
      _
    // Predicated region
    $region6: #{_lambda_.1} parent=1 // pred_check
      _
    $region7: #{_lambda_.1} parent=1 // pred_check_branch
      %17 = sbr.rel (0) target = $region9
    $region8: #{_lambda_.1} parent=1 // pred_region
      _
    $region9: #{_lambda_.1} parent=1 // pred_fallthru
      _
    // Predicated region
    $region10: #{_lambda_.1} parent=1 // pred_check
      _
    $region11: #{_lambda_.1} parent=1 // pred_check_branch
      %19 = sbr.rel (0) target = $region13
    $region12: #{_lambda_.1} parent=1 // pred_region
      %s21 = ssub.s32 16, 16
      %22 = vsyncadd [#allocation3], %s21
      %s24 = sshll.u32 [#allocation2], 4
      %s25 = int_to_ptr.vmem [resolvable:$true] %s24
      %27 = dma.hbm_to_vmem [thread:$0]  %s2, 16, %s25, [#allocation3]
    $region13: #{_lambda_.1} parent=1 // pred_fallthru
      _
    // Predicated region
    $region14: #{_lambda_.1} parent=1 // pred_check
      _
    $region15: #{_lambda_.1} parent=1 // pred_check_branch
      %29 = sbr.rel (0) target = $region17
    $region16: #{_lambda_.1} parent=1 // pred_region
      %s31 = ssub.s32 384, 384
      %32 = vsyncadd [#allocation5], %s31
      %s33 = sshll.u32 [#allocation4], 4
      %s34 = int_to_ptr.vmem [resolvable:$true] %s33
      %39 = dma.hbm_to_vmem [thread:$0]  %s3, 384, %s34, [#allocation5], 128, 128, 8
    $region17: #{_lambda_.1} parent=1 // pred_fallthru
      _
    // Predicated region
    $region18: #{_lambda_.1} parent=1 // pred_check
      _
    $region19: #{_lambda_.1} parent=1 // pred_check_branch
      %41 = sbr.rel (0) target = $region21
    $region20: #{_lambda_.1} parent=1 // pred_region
      _
    $region21: #{_lambda_.1} parent=1 // pred_fallthru
      _
    // Predicated region
    $region22: #{_lambda_.1} parent=1 // pred_check
      _
    $region23: #{_lambda_.1} parent=1 // pred_check_branch
      %43 = sbr.rel (0) target = $region25
    $region24: #{_lambda_.1} parent=1 // pred_region
      _
    $region25: #{_lambda_.1} parent=1 // pred_fallthru
      _
    // Predicated region
    $region26: #{_lambda_.1} parent=1 // pred_check
      _
    $region27: #{_lambda_.1} parent=1 // pred_check_branch
      %45 = sbr.rel (0) target = $region29
    $region28: #{_lambda_.1} parent=1 // pred_region
      _
    $region29: #{_lambda_.1} parent=1 // pred_fallthru
      _
    // Predicated region
    $region30: #{_lambda_.1} parent=1 // pred_check
      _
    $region31: #{_lambda_.1} parent=1 // pred_check_branch
      %47 = sbr.rel (0) target = $region33
    $region32: #{_lambda_.1} parent=1 // pred_region
      %48 = dma.done [#allocation3], 16
    $region33: #{_lambda_.1} parent=1 // pred_fallthru
      _
    // Predicated region
    $region34: #{_lambda_.1} parent=1 // pred_check
      _
    $region35: #{_lambda_.1} parent=1 // pred_check_branch
      %50 = sbr.rel (0) target = $region37
    $region36: #{_lambda_.1} parent=1 // pred_region
      %51 = dma.done [#allocation5], 384
    $region37: #{_lambda_.1} parent=1 // pred_fallthru
      _
    %v52 = vld [vmem:[%s0] sm:$0xff]
    %v53 = vld [vmem:[%s1] sm:$0xf]
    %v54 = vld [vmem:[#allocation2] sm:$0x1]
    %v56 = vlaneseq
    %v57 = vshrl.u32 %v56, 7
    %v58 = vsub.s32 0, %v57
    %v59 = vrot.slane %v54, %v58
    %vm61 = vcmask 31744
    %v63 = vsel %vm61, %v52, 0
    %vm65 = vcmask 1043456
    %v67 = vsel %vm65, %v53, 0
    %69 = vmatprep.subr.mxu0 0.0
    %70 = vmatpush1.msra.mxu0 %v67
    %71 = vmatprep.subr.mxu0 0.0
    %72 = vmatpush1.msra.mxu0 0.0
    %73 = vmatprep.subr.mxu0 0.0
    %74 = vmatpush1.msra.mxu0 0.0
    %75 = vmatprep.subr.mxu0 0.0
    %76 = vmatpush1.msra.mxu0 0.0
    %77 = vmatprep.subr.mxu0 0.0
    %78 = vmatpush1.msra.mxu0 0.0
    %79 = vmatprep.subr.mxu0 0.0
    %80 = vmatpush1.msra.mxu0 0.0
    %81 = vmatprep.subr.mxu0 0.0
    %82 = vmatpush1.msra.mxu0 0.0
    %83 = vmatprep.subr.mxu0 0.0
    %84 = vmatpush1.msra.mxu0 0.0
    %85 = vmatprep.subr.mxu0 0.0
    %86 = vmatpush1.msra.mxu0 0.0
    %87 = vmatprep.subr.mxu0 0.0
    %88 = vmatpush1.msra.mxu0 0.0
    %89 = vmatprep.subr.mxu0 0.0
    %90 = vmatpush1.msra.mxu0 0.0
    %91 = vmatprep.subr.mxu0 0.0
    %92 = vmatpush1.msra.mxu0 0.0
    %93 = vmatprep.subr.mxu0 0.0
    %94 = vmatpush1.msra.mxu0 0.0
    %95 = vmatprep.subr.mxu0 0.0
    %96 = vmatpush1.msra.mxu0 0.0
    %97 = vmatprep.subr.mxu0 0.0
    %98 = vmatpush1.msra.mxu0 0.0
    %99 = vmatprep.subr.mxu0 0.0
    %100 = vmatpush1.msra.mxu0 0.0
    %101 = vmatprep.subr.mxu0 0.0
    %102 = vmatpush1.msra.mxu0 0.0
    %103 = vmatprep.subr.mxu0 0.0
    %104 = vmatpush1.msra.mxu0 0.0
    %105 = vmatprep.subr.mxu0 0.0
    %106 = vmatpush1.msra.mxu0 0.0
    %107 = vmatprep.subr.mxu0 0.0
    %108 = vmatpush1.msra.mxu0 0.0
    %109 = vmatprep.subr.mxu0 0.0
    %110 = vmatpush1.msra.mxu0 0.0
    %111 = vmatprep.subr.mxu0 0.0
    %112 = vmatpush1.msra.mxu0 0.0
    %113 = vmatprep.subr.mxu0 0.0
    %114 = vmatpush1.msra.mxu0 0.0
    %115 = vmatprep.subr.mxu0 0.0
    %116 = vmatpush1.msra.mxu0 0.0
    %117 = vmatprep.subr.mxu0 0.0
    %118 = vmatpush1.msra.mxu0 0.0
    %119 = vmatprep.subr.mxu0 0.0
    %120 = vmatpush1.msra.mxu0 0.0
    %121 = vmatprep.subr.mxu0 0.0
    %122 = vmatpush1.msra.mxu0 0.0
    %123 = vmatprep.subr.mxu0 0.0
    %124 = vmatpush1.msra.mxu0 0.0
    %125 = vmatprep.subr.mxu0 0.0
    %126 = vmatpush1.msra.mxu0 0.0
    %127 = vmatprep.subr.mxu0 0.0
    %128 = vmatpush1.msra.mxu0 0.0
    %129 = vmatprep.subr.mxu0 0.0
    %130 = vmatpush1.msra.mxu0 0.0
    %131 = vmatprep.subr.mxu0 0.0
    %132 = vmatpush1.msra.mxu0 0.0
    %133 = vmatprep.mubr.f32.mxu0 0.0
    %134 = vmatmul.mubr.f32.gmra.mrb[0].mxu0 %v63
    %v135 = vpop.f32.mrb[0].mxu0
    %v136 = vadd.f32 %v59, %v135
    %v137 = vpop.f32.mrb[0].mxu0
    %138 = vdwg.mxu0
    %v139 = vmax.f32 %v136, 0.0
    %v140 = vld [vmem:[#allocation4] sm:$0xff]
    %v141 = vld [vmem:[#allocation4 + $0x8] sm:$0xff]
    %v142 = vld [vmem:[#allocation4 + $0x10] sm:$0xff]
    %v143 = vld [vmem:[%s4] sm:$0x1]
    %v145 = vlaneseq
    %v146 = vshrl.u32 %v145, 7
    %v147 = vsub.s32 0, %v146
    %v148 = vrot.slane %v143, %v147
    %vm150 = vcmask 195584
    %v152 = vsel %vm150, %v139, 0
    %154 = vmatprep.subr.mxu0 0.0
    %155 = vmatpush1.msra.mxu0 %v140
    %156 = vmatprep.subr.mxu0 0.0
    %157 = vmatpush1.msra.mxu0 %v141
    %158 = vmatprep.subr.mxu0 0.0
    %159 = vmatpush1.msra.mxu0 %v142
    %160 = vmatprep.subr.mxu0 0.0
    %161 = vmatpush1.msra.mxu0 0.0
    %162 = vmatprep.subr.mxu0 0.0
    %163 = vmatpush1.msra.mxu0 0.0
    %164 = vmatprep.subr.mxu0 0.0
    %165 = vmatpush1.msra.mxu0 0.0
    %166 = vmatprep.subr.mxu0 0.0
    %167 = vmatpush1.msra.mxu0 0.0
    %168 = vmatprep.subr.mxu0 0.0
    %169 = vmatpush1.msra.mxu0 0.0
    %170 = vmatprep.subr.mxu0 0.0
    %171 = vmatpush1.msra.mxu0 0.0
    %172 = vmatprep.subr.mxu0 0.0
    %173 = vmatpush1.msra.mxu0 0.0
    %174 = vmatprep.subr.mxu0 0.0
    %175 = vmatpush1.msra.mxu0 0.0
    %176 = vmatprep.subr.mxu0 0.0
    %177 = vmatpush1.msra.mxu0 0.0
    %178 = vmatprep.subr.mxu0 0.0
    %179 = vmatpush1.msra.mxu0 0.0
    %180 = vmatprep.subr.mxu0 0.0
    %181 = vmatpush1.msra.mxu0 0.0
    %182 = vmatprep.subr.mxu0 0.0
    %183 = vmatpush1.msra.mxu0 0.0
    %184 = vmatprep.subr.mxu0 0.0
    %185 = vmatpush1.msra.mxu0 0.0
    %186 = vmatprep.subr.mxu0 0.0
    %187 = vmatpush1.msra.mxu0 0.0
    %188 = vmatprep.subr.mxu0 0.0
    %189 = vmatpush1.msra.mxu0 0.0
    %190 = vmatprep.subr.mxu0 0.0
    %191 = vmatpush1.msra.mxu0 0.0
    %192 = vmatprep.subr.mxu0 0.0
    %193 = vmatpush1.msra.mxu0 0.0
    %194 = vmatprep.subr.mxu0 0.0
    %195 = vmatpush1.msra.mxu0 0.0
    %196 = vmatprep.subr.mxu0 0.0
    %197 = vmatpush1.msra.mxu0 0.0
    %198 = vmatprep.subr.mxu0 0.0
    %199 = vmatpush1.msra.mxu0 0.0
    %200 = vmatprep.subr.mxu0 0.0
    %201 = vmatpush1.msra.mxu0 0.0
    %202 = vmatprep.subr.mxu0 0.0
    %203 = vmatpush1.msra.mxu0 0.0
    %204 = vmatprep.subr.mxu0 0.0
    %205 = vmatpush1.msra.mxu0 0.0
    %206 = vmatprep.subr.mxu0 0.0
    %207 = vmatpush1.msra.mxu0 0.0
    %208 = vmatprep.subr.mxu0 0.0
    %209 = vmatpush1.msra.mxu0 0.0
    %210 = vmatprep.subr.mxu0 0.0
    %211 = vmatpush1.msra.mxu0 0.0
    %212 = vmatprep.subr.mxu0 0.0
    %213 = vmatpush1.msra.mxu0 0.0
    %214 = vmatprep.subr.mxu0 0.0
    %215 = vmatpush1.msra.mxu0 0.0
    %216 = vmatprep.subr.mxu0 0.0
    %217 = vmatpush1.msra.mxu0 0.0
    %218 = vmatprep.mubr.f32.mxu0 0.0
    %219 = vmatmul.mubr.f32.gmra.mrb[0].mxu0 %v152
    %v220 = vpop.f32.mrb[0].mxu0
    %v221 = vadd.f32 %v148, %v220
    %v222 = vpop.f32.mrb[0].mxu0
    %223 = vdwg.mxu0
    %v224 = vmax.f32 %v221, 0.0
    %v225 = vld [vmem:[%s5] sm:$0xff]
    %v226 = vld [vmem:[%s5 + $0x8] sm:$0xff]
    %v227 = vld [vmem:[%s5 + $0x10] sm:$0xff]
    %v228 = vld [vmem:[%s6] sm:$0x1]
    %v230 = vlaneseq
    %v231 = vshrl.u32 %v230, 7
    %v232 = vsub.s32 0, %v231
    %v233 = vrot.slane %v228, %v232
    %v236 = vsel %vm150, %v224, 0
    %238 = vmatprep.subr.mxu0 0.0
    %239 = vmatpush1.msra.mxu0 %v225
    %240 = vmatprep.subr.mxu0 0.0
    %241 = vmatpush1.msra.mxu0 %v226
    %242 = vmatprep.subr.mxu0 0.0
    %243 = vmatpush1.msra.mxu0 %v227
    %244 = vmatprep.subr.mxu0 0.0
    %245 = vmatpush1.msra.mxu0 0.0
    %246 = vmatprep.subr.mxu0 0.0
    %247 = vmatpush1.msra.mxu0 0.0
    %248 = vmatprep.subr.mxu0 0.0
    %249 = vmatpush1.msra.mxu0 0.0
    %250 = vmatprep.subr.mxu0 0.0
    %251 = vmatpush1.msra.mxu0 0.0
    %252 = vmatprep.subr.mxu0 0.0
    %253 = vmatpush1.msra.mxu0 0.0
    %254 = vmatprep.subr.mxu0 0.0
    %255 = vmatpush1.msra.mxu0 0.0
    %256 = vmatprep.subr.mxu0 0.0
    %257 = vmatpush1.msra.mxu0 0.0
    %258 = vmatprep.subr.mxu0 0.0
    %259 = vmatpush1.msra.mxu0 0.0
    %260 = vmatprep.subr.mxu0 0.0
    %261 = vmatpush1.msra.mxu0 0.0
    %262 = vmatprep.subr.mxu0 0.0
    %263 = vmatpush1.msra.mxu0 0.0
    %264 = vmatprep.subr.mxu0 0.0
    %265 = vmatpush1.msra.mxu0 0.0
    %266 = vmatprep.subr.mxu0 0.0
    %267 = vmatpush1.msra.mxu0 0.0
    %268 = vmatprep.subr.mxu0 0.0
    %269 = vmatpush1.msra.mxu0 0.0
    %270 = vmatprep.subr.mxu0 0.0
    %271 = vmatpush1.msra.mxu0 0.0
    %272 = vmatprep.subr.mxu0 0.0
    %273 = vmatpush1.msra.mxu0 0.0
    %274 = vmatprep.subr.mxu0 0.0
    %275 = vmatpush1.msra.mxu0 0.0
    %276 = vmatprep.subr.mxu0 0.0
    %277 = vmatpush1.msra.mxu0 0.0
    %278 = vmatprep.subr.mxu0 0.0
    %279 = vmatpush1.msra.mxu0 0.0
    %280 = vmatprep.subr.mxu0 0.0
    %281 = vmatpush1.msra.mxu0 0.0
    %282 = vmatprep.subr.mxu0 0.0
    %283 = vmatpush1.msra.mxu0 0.0
    %284 = vmatprep.subr.mxu0 0.0
    %285 = vmatpush1.msra.mxu0 0.0
    %286 = vmatprep.subr.mxu0 0.0
    %287 = vmatpush1.msra.mxu0 0.0
    %288 = vmatprep.subr.mxu0 0.0
    %289 = vmatpush1.msra.mxu0 0.0
    %290 = vmatprep.subr.mxu0 0.0
    %291 = vmatpush1.msra.mxu0 0.0
    %292 = vmatprep.subr.mxu0 0.0
    %293 = vmatpush1.msra.mxu0 0.0
    %294 = vmatprep.subr.mxu0 0.0
    %295 = vmatpush1.msra.mxu0 0.0
    %296 = vmatprep.subr.mxu0 0.0
    %297 = vmatpush1.msra.mxu0 0.0
    %298 = vmatprep.subr.mxu0 0.0
    %299 = vmatpush1.msra.mxu0 0.0
    %300 = vmatprep.subr.mxu0 0.0
    %301 = vmatpush1.msra.mxu0 0.0
    %302 = vmatprep.mubr.f32.mxu0 0.0
    %303 = vmatmul.mubr.f32.gmra.mrb[0].mxu0 %v236
    %v304 = vpop.f32.mrb[0].mxu0
    %v305 = vadd.f32 %v233, %v304
    %v306 = vpop.f32.mrb[0].mxu0
    %307 = vdwg.mxu0
    %v308 = vlaneseq
    %v309 = vand.u32 %v308, 127
    %vm310 = vcmp.lt.s32.totalorder %v309, 2
    %v311 = vsel %vm310, %v305, 0.0
    %vm312 = vcmask 64512
    %v313 = vsel %vm312, %v311, 0.0
    %314 = vadd.xlane.f32.xlu0 %v313
    %v315 = vpop.xlane.xlu0 %314
    %v316 = vrcp.pop 2.0
    %v317 = vmul.f32 %v315, %v316
    %v318 = vsub.f32 %v305, %v317
    %320 = vset.pattern.permute.xlu0 2
    %321 = vperm.xlu0 %320, %v318
    %v322 = vpop.permute.xlu0 %321
    %v324 = vadd.f32 %v305, %v322
    %325 = vst.msk [vmem:[%s7] sm:$0xff] %vm312, %v324
    // Predicated region
    $region38: #{_lambda_.1} parent=1 // pred_check
      _
    $region39: #{_lambda_.1} parent=1 // pred_check_branch
      %327 = sbr.rel (0) target = $region41
    $region40: #{_lambda_.1} parent=1 // pred_region
      _
    $region41: #{_lambda_.1} parent=1 // pred_fallthru
      _
    // Predicated region
    $region42: #{_lambda_.1} parent=1 // pred_check
      _
    $region43: #{_lambda_.1} parent=1 // pred_check_branch
      %329 = sbr.rel (0) target = $region45
    $region44: #{_lambda_.1} parent=1 // pred_region
      _
    $region45: #{_lambda_.1} parent=1 // pred_fallthru
      _
    %330 = vsyncpa [#allocation3], 1
    %331 = vsyncpa [#allocation5], 1

</llo_original>
